<compile_context>
chip_gen: v6e
topology: v6e:2x2x1
jax: 0.10.0
libtpu: 0.0.40
codegen_flags: <defaults>
</compile_context>

<pallas_src>
import functools

import jax
import jax.numpy as jnp
from jax.experimental import pallas as pl
from jax.experimental.pallas import tpu as pltpu

# Conservative double-buffered working-set budget (fits the default scoped
# VMEM on v5e (16 MiB) and v6e/v7x (32 MiB)).
_VMEM_BUDGET_BYTES = 12 * 1024 * 1024


def _largest_divisor_leq(n, cap):
    cap = max(1, min(n, int(cap)))
    for d in range(cap, 0, -1):
        if n % d == 0:
            return d
    return 1


def _pick_tile_t(t):
    """Largest T tile (multiple of 128, <=2048) that divides T, else full T."""
    for cand in (2048, 1024, 512, 256, 128):
        if t % cand == 0:
            return cand
    return t


# --------------------------------------------------------------------------
# Fused single-pass kernel: pool + SE MLP + gate application per batch slab.
# --------------------------------------------------------------------------
def _fused_se_kernel(x_ref, w1_ref, b1_ref, w2_ref, b2_ref, out_ref, *, inv_t):
    """x_ref/out_ref: (tb, C, T) native dtype; weights pre-transposed f32."""
    x = x_ref[...].astype(jnp.float32)                                  # (tb,C,T)
    mean = jnp.sum(x, axis=-1) * inv_t                                  # (tb,C)
    h = jnp.dot(mean, w1_ref[...],
                preferred_element_type=jnp.float32) + b1_ref[...]       # (tb,SE)
    h = jnp.maximum(h, 0.0)
    logits = jnp.dot(h, w2_ref[...],
                     preferred_element_type=jnp.float32) + b2_ref[...]  # (tb,C)
    gate = jax.nn.sigmoid(logits)
    out_ref[...] = (x * gate[:, :, None]).astype(out_ref.dtype)


# --------------------------------------------------------------------------
# Fallback two-pass kernels for very long T (tiled reduction + apply).
# --------------------------------------------------------------------------
def _pool_se_kernel(x_ref, w1_ref, b1_ref, w2_ref, b2_ref, gate_ref, *, inv_t):
    """Pass 1: accumulate per-channel sums over T tiles; finalize SE MLP."""
    t_idx = pl.program_id(1)

    @pl.when(t_idx == 0)
    def _():
        gate_ref[...] = jnp.zeros_like(gate_ref)

    gate_ref[...] += jnp.sum(x_ref[...].astype(jnp.float32), axis=-1)

    @pl.when(t_idx == pl.num_programs(1) - 1)
    def _():
        mean = gate_ref[...] * inv_t                                    # (1, C)
        h = jnp.dot(mean, w1_ref[...],
                    preferred_element_type=jnp.float32) + b1_ref[...]   # (1, SE)
        h = jnp.maximum(h, 0.0)
        logits = jnp.dot(h, w2_ref[...],
                         preferred_element_type=jnp.float32) + b2_ref[...]
        gate_ref[...] = jax.nn.sigmoid(logits)


def _apply_gate_kernel(x_ref, gate_ref, out_ref):
    """Pass 2: out = x * gate broadcast over the T (lane) dimension."""
    x = x_ref[...].astype(jnp.float32)
    out_ref[...] = (x * gate_ref[...][:, :, None]).astype(out_ref.dtype)


@jax.jit
def freq_att_layer(x, w1, b1, w2, b2):
    """x: (B, C, T). w1: (SE, C), b1: (SE,), w2: (C, SE), b2: (C,) (PyTorch layout).

    Returns x * sigmoid(W2 @ relu(W1 @ mean_T(x) + b1) + b2)[..., None].
    """
    b, c, t = x.shape
    se = w1.shape[0]

    w1t = w1.T.astype(jnp.float32)              # (C, SE)
    b1r = b1.reshape(1, se).astype(jnp.float32)
    w2t = w2.T.astype(jnp.float32)              # (SE, C)
    b2r = b2.reshape(1, c).astype(jnp.float32)

    x_item = x.dtype.itemsize
    # Per batch row at one grid step: 2x double-buffered input + 2x output
    # blocks (native dtype) + one f32 in-kernel temporary.
    per_row_bytes = c * t * (4 * x_item + 4)

    if per_row_bytes <= _VMEM_BUDGET_BYTES:
        # -------- Fused single pass: x read once, result written once. -----
        tb = _largest_divisor_leq(b, _VMEM_BUDGET_BYTES // per_row_bytes)
        cost = pl.CostEstimate(
            flops=2 * b * c * t + 4 * b * c * se,
            transcendentals=b * c,
            bytes_accessed=2 * x.size * x_item
            + (w1t.size + w2t.size + se + c) * 4)

        return pl.pallas_call(
            functools.partial(_fused_se_kernel, inv_t=1.0 / t),
            out_shape=jax.ShapeDtypeStruct((b, c, t), x.dtype),
            grid_spec=pltpu.PrefetchScalarGridSpec(
                num_scalar_prefetch=0,
                grid=(b // tb,),
                in_specs=[
                    pl.BlockSpec((tb, c, t), lambda i: (i, 0, 0)),
                    pl.BlockSpec((c, se), lambda i: (0, 0)),
                    pl.BlockSpec((1, se), lambda i: (0, 0)),
                    pl.BlockSpec((se, c), lambda i: (0, 0)),
                    pl.BlockSpec((1, c), lambda i: (0, 0)),
                ],
                out_specs=pl.BlockSpec((tb, c, t), lambda i: (i, 0, 0)),
            ),
            compiler_params=pltpu.CompilerParams(
                dimension_semantics=("parallel",)),
            cost_estimate=cost,
        )(x, w1t, b1r, w2t, b2r)

    # ------------ Fallback: very long T -> tiled two-pass scheme. ----------
    tile_t = _pick_tile_t(t)
    n_t = t // tile_t

    pool_cost = pl.CostEstimate(
        flops=b * c * t + 4 * b * c * se,
        transcendentals=b * c,
        bytes_accessed=x.size * x_item
        + (w1t.size + w2t.size + se + c + b * c) * 4)

    gate = pl.pallas_call(
        functools.partial(_pool_se_kernel, inv_t=1.0 / t),
        out_shape=jax.ShapeDtypeStruct((b, c), jnp.float32),
        grid_spec=pltpu.PrefetchScalarGridSpec(
            num_scalar_prefetch=0,
            grid=(b, n_t),
            in_specs=[
                pl.BlockSpec((1, c, tile_t), lambda bi, ti: (bi, 0, ti)),
                pl.BlockSpec((c, se), lambda bi, ti: (0, 0)),
                pl.BlockSpec((1, se), lambda bi, ti: (0, 0)),
                pl.BlockSpec((se, c), lambda bi, ti: (0, 0)),
                pl.BlockSpec((1, c), lambda bi, ti: (0, 0)),
            ],
            out_specs=pl.BlockSpec((1, c), lambda bi, ti: (bi, 0)),
        ),
        compiler_params=pltpu.CompilerParams(
            dimension_semantics=("parallel", "arbitrary")),
        cost_estimate=pool_cost,
    )(x, w1t, b1r, w2t, b2r)

    apply_cost = pl.CostEstimate(
        flops=b * c * t,
        transcendentals=0,
        bytes_accessed=2 * x.size * x_item + b * c * 4)

    return pl.pallas_call(
        _apply_gate_kernel,
        out_shape=jax.ShapeDtypeStruct((b, c, t), x.dtype),
        grid_spec=pltpu.PrefetchScalarGridSpec(
            num_scalar_prefetch=0,
            grid=(b, n_t),
            in_specs=[
                pl.BlockSpec((1, c, tile_t), lambda bi, ti: (bi, 0, ti)),
                pl.BlockSpec((1, c), lambda bi, ti: (bi, 0)),
            ],
            out_specs=pl.BlockSpec((1, c, tile_t), lambda bi, ti: (bi, 0, ti)),
        ),
        compiler_params=pltpu.CompilerParams(
            dimension_semantics=("parallel", "parallel")),
        cost_estimate=apply_cost,
    )(x, gate)


def _reference(x, w1, b1, w2, b2):
    """Pure-JAX reference matching the PyTorch forward (B > 1 case)."""
    y = jnp.mean(x.astype(jnp.float32), axis=-1)             # avg_pool(x).squeeze()
    h = jnp.maximum(y @ w1.T + b1, 0.0)                       # Linear + ReLU
    s = jax.nn.sigmoid(h @ w2.T + b2)                         # Linear + Sigmoid
    return (x.astype(jnp.float32) * s[:, :, None]).astype(x.dtype)


if __name__ == "__main__":
    # Module defaults: sub_channel=160, SE_neur=8.  Small sequence length.
    B, C, T, SE = 2, 160, 16, 8

    key = jax.random.PRNGKey(0)
    kx, k1, k2, k3, k4 = jax.random.split(key, 5)

    x = jax.random.normal(kx, (B, C, T), dtype=jnp.float32)

    # PyTorch nn.Linear default init: U(-1/sqrt(fan_in), 1/sqrt(fan_in)).
    bound1 = 1.0 / (C ** 0.5)
    w1 = jax.random.uniform(k1, (SE, C), minval=-bound1, maxval=bound1,
                            dtype=jnp.float32)
    b1 = jax.random.uniform(k2, (SE,), minval=-bound1, maxval=bound1,
                            dtype=jnp.float32)
    bound2 = 1.0 / (SE ** 0.5)
    w2 = jax.random.uniform(k3, (C, SE), minval=-bound2, maxval=bound2,
                            dtype=jnp.float32)
    b2 = jax.random.uniform(k4, (C,), minval=-bound2, maxval=bound2,
                            dtype=jnp.float32)

    out = jax.block_until_ready(freq_att_layer(x, w1, b1, w2, b2))
    ref = jax.block_until_ready(_reference(x, w1, b1, w2, b2))

    assert out.shape == (B, C, T), out.shape
    assert jnp.allclose(out, ref, atol=1e-5, rtol=1e-5), \
        float(jnp.max(jnp.abs(out - ref)))

    print("KERNEL_OK")
</pallas_src>

<mosaic_0001>
module attributes {stable_mosaic.version = 11 : i64} {
  func.func @_fused_se_kernel(%arg0: i32, %arg1: memref<2x160x16xf32, #tpu.memory_space<vmem>>, %arg2: memref<160x8xf32, #tpu.memory_space<vmem>>, %arg3: memref<1x8xf32, #tpu.memory_space<vmem>>, %arg4: memref<8x160xf32, #tpu.memory_space<vmem>>, %arg5: memref<1x160xf32, #tpu.memory_space<vmem>>, %arg6: memref<2x160x16xf32, #tpu.memory_space<vmem>>) attributes {dimension_semantics = [#tpu.dimension_semantics<parallel>], iteration_bounds = array<i64: 1>, scalar_prefetch = 0 : i64, scratch_operands = 0 : i64, tpu.core_type = #tpu.core_type<tc>, window_params = [{transform_indices = @transform_0, window_bounds = array<i64: 2, 160, 16>}, {pipeline_mode = #tpu.pipeline_mode<synchronous>, transform_indices = @transform_1, window_bounds = array<i64: 160, 8>}, {pipeline_mode = #tpu.pipeline_mode<synchronous>, transform_indices = @transform_2, window_bounds = array<i64: 1, 8>}, {pipeline_mode = #tpu.pipeline_mode<synchronous>, transform_indices = @transform_3, window_bounds = array<i64: 8, 160>}, {pipeline_mode = #tpu.pipeline_mode<synchronous>, transform_indices = @transform_4, window_bounds = array<i64: 1, 160>}, {transform_indices = @transform_5, window_bounds = array<i64: 2, 160, 16>}]} {
    %c0 = arith.constant 0 : index
    %c0_0 = arith.constant 0 : index
    %c0_1 = arith.constant 0 : index
    %0 = vector.load %arg1[%c0, %c0_0, %c0_1] : memref<2x160x16xf32, #tpu.memory_space<vmem>>, vector<2x160x16xf32>
    %cst = arith.constant dense<0.000000e+00> : vector<2x160xf32>
    %1 = vector.multi_reduction <add>, %0, %cst [2] : vector<2x160x16xf32> to vector<2x160xf32>
    %cst_2 = arith.constant 6.250000e-02 : f32
    %2 = vector.broadcast %cst_2 : f32 to vector<2x160xf32>
    %3 = arith.mulf %1, %2 : vector<2x160xf32>
    %c0_3 = arith.constant 0 : index
    %c0_4 = arith.constant 0 : index
    %4 = vector.load %arg2[%c0_3, %c0_4] : memref<160x8xf32, #tpu.memory_space<vmem>>, vector<160x8xf32>
    %cst_5 = arith.constant dense<0.000000e+00> : vector<2x8xf32>
    %5 = tpu.matmul %3, %4, %cst_5 {dimension_numbers = #tpu.dot_dimension_numbers<[1], [0], [0], [1], [0, 0, 1, 1], [], []>} : vector<2x160xf32>, vector<160x8xf32>, vector<2x8xf32> -> vector<2x8xf32>
    %c0_6 = arith.constant 0 : index
    %c0_7 = arith.constant 0 : index
    %6 = vector.load %arg3[%c0_6, %c0_7] : memref<1x8xf32, #tpu.memory_space<vmem>>, vector<1x8xf32>
    %7 = vector.broadcast %6 : vector<1x8xf32> to vector<2x8xf32>
    %8 = arith.addf %5, %7 : vector<2x8xf32>
    %cst_8 = arith.constant 0.000000e+00 : f32
    %9 = vector.broadcast %cst_8 : f32 to vector<2x8xf32>
    %10 = arith.maximumf %8, %9 : vector<2x8xf32>
    %c0_9 = arith.constant 0 : index
    %c0_10 = arith.constant 0 : index
    %11 = vector.load %arg4[%c0_9, %c0_10] : memref<8x160xf32, #tpu.memory_space<vmem>>, vector<8x160xf32>
    %cst_11 = arith.constant dense<0.000000e+00> : vector<2x160xf32>
    %12 = tpu.matmul %10, %11, %cst_11 {dimension_numbers = #tpu.dot_dimension_numbers<[1], [0], [0], [1], [0, 0, 1, 1], [], []>} : vector<2x8xf32>, vector<8x160xf32>, vector<2x160xf32> -> vector<2x160xf32>
    %c0_12 = arith.constant 0 : index
    %c0_13 = arith.constant 0 : index
    %13 = vector.load %arg5[%c0_12, %c0_13] : memref<1x160xf32, #tpu.memory_space<vmem>>, vector<1x160xf32>
    %14 = vector.broadcast %13 : vector<1x160xf32> to vector<2x160xf32>
    %15 = arith.addf %12, %14 : vector<2x160xf32>
    %16 = arith.negf %15 : vector<2x160xf32>
    %17 = math.exp %16 : vector<2x160xf32>
    %cst_14 = arith.constant 1.000000e+00 : f32
    %18 = vector.broadcast %cst_14 : f32 to vector<2x160xf32>
    %19 = arith.addf %18, %17 : vector<2x160xf32>
    %20 = arith.divf %18, %19 : vector<2x160xf32>
    %21 = vector.shape_cast %20 : vector<2x160xf32> to vector<2x160x1xf32>
    %22 = vector.broadcast %21 : vector<2x160x1xf32> to vector<2x160x16xf32>
    %23 = arith.mulf %0, %22 : vector<2x160x16xf32>
    %c0_15 = arith.constant 0 : index
    %c0_16 = arith.constant 0 : index
    %c0_17 = arith.constant 0 : index
    %24 = vector.load %arg6[%c0_15, %c0_16, %c0_17] : memref<2x160x16xf32, #tpu.memory_space<vmem>>, vector<2x160x16xf32>
    tpu.vector_store %arg6[%c0_15, %c0_16, %c0_17], %23 {strides = array<i32>} : memref<2x160x16xf32, #tpu.memory_space<vmem>>, vector<2x160x16xf32>,
    return
  }
  func.func @transform_0(%arg0: i32) -> (i32, i32, i32) {
    %c0_i32 = arith.constant 0 : i32
    %c0_i32_0 = arith.constant 0 : i32
    %c0_i32_1 = arith.constant 0 : i32
    return %arg0, %c0_i32, %c0_i32_0 : i32, i32, i32
  }
  func.func @transform_1(%arg0: i32) -> (i32, i32) {
    %c0_i32 = arith.constant 0 : i32
    %c0_i32_0 = arith.constant 0 : i32
    %c0_i32_1 = arith.constant 0 : i32
    return %c0_i32, %c0_i32_0 : i32, i32
  }
  func.func @transform_2(%arg0: i32) -> (i32, i32) {
    %c0_i32 = arith.constant 0 : i32
    %c0_i32_0 = arith.constant 0 : i32
    %c0_i32_1 = arith.constant 0 : i32
    return %c0_i32, %c0_i32_0 : i32, i32
  }
  func.func @transform_3(%arg0: i32) -> (i32, i32) {
    %c0_i32 = arith.constant 0 : i32
    %c0_i32_0 = arith.constant 0 : i32
    %c0_i32_1 = arith.constant 0 : i32
    return %c0_i32, %c0_i32_0 : i32, i32
  }
  func.func @transform_4(%arg0: i32) -> (i32, i32) {
    %c0_i32 = arith.constant 0 : i32
    %c0_i32_0 = arith.constant 0 : i32
    %c0_i32_1 = arith.constant 0 : i32
    return %c0_i32, %c0_i32_0 : i32, i32
  }
  func.func @transform_5(%arg0: i32) -> (i32, i32, i32) {
    %c0_i32 = arith.constant 0 : i32
    %c0_i32_0 = arith.constant 0 : i32
    %c0_i32_1 = arith.constant 0 : i32
    return %arg0, %c0_i32, %c0_i32_0 : i32, i32, i32
  }
}

</mosaic_0001>

<llo_original>
// kernel: freq_att_layer.1
$region0: #{freq_att_layer.1}
  #allocation0 [shape = 'u32[]', space=smem, size = 0x4, offset = 0x4, fixed_abs, tag = 'smem constant byte address 0x4 - core index']
  #allocation1 [shape = 'u32[144,128]{1,0:T(1,128)}', space=vmem, size = 0x12000, scoped, tag = 'internal scratch']
  %s0 = inlined_call_operand.vmem [shape: f32[2,160,16], index: 0, kind: input, shape index: {}]
  %s1 = inlined_call_operand.vmem [shape: f32[160,8], index: 1, kind: input, shape index: {}]
  %s2 = inlined_call_operand.vmem [shape: f32[1,8], index: 2, kind: input, shape index: {}]
  %s3 = inlined_call_operand.vmem [shape: f32[8,160], index: 3, kind: input, shape index: {}]
  %s4 = inlined_call_operand.vmem [shape: f32[1,160], index: 4, kind: input, shape index: {}]
  %s5 = inlined_call_operand.vmem [shape: f32[2,160,16], index: 5, kind: output, shape index: {}]
  %s6 = sld [smem:[#allocation0]]
  $region30: #{freq_att_layer.1} parent=0
    _
  %s8 = ssub.s32 1, %s6
  %s9 = scalar_select 0, %s8, %s6
  // Predicated region
  $region2: #{freq_att_layer.1} parent=0 // pred_check
    _
  $region3: #{freq_att_layer.1} parent=0 // pred_check_branch
    %11 = sbr.rel (0) target = $region5
  $region4: #{freq_att_layer.1} parent=0 // pred_region
    _
  $region5: #{freq_att_layer.1} parent=0 // pred_fallthru
    _
  // Predicated region
  $region6: #{freq_att_layer.1} parent=0 // pred_check
    _
  $region7: #{freq_att_layer.1} parent=0 // pred_check_branch
    %13 = sbr.rel (0) target = $region9
  $region8: #{freq_att_layer.1} parent=0 // pred_region
    _
  $region9: #{freq_att_layer.1} parent=0 // pred_fallthru
    _
  // Predicated region
  $region10: #{freq_att_layer.1} parent=0 // pred_check
    _
  $region11: #{freq_att_layer.1} parent=0 // pred_check_branch
    %15 = sbr.rel (0) target = $region13
  $region12: #{freq_att_layer.1} parent=0 // pred_region
    _
  $region13: #{freq_att_layer.1} parent=0 // pred_fallthru
    _
  // Predicated region
  $region14: #{freq_att_layer.1} parent=0 // pred_check
    _
  $region15: #{freq_att_layer.1} parent=0 // pred_check_branch
    %17 = sbr.rel (0) target = $region17
  $region16: #{freq_att_layer.1} parent=0 // pred_region
    _
  $region17: #{freq_att_layer.1} parent=0 // pred_fallthru
    _
  // Predicated region
  $region18: #{freq_att_layer.1} parent=0 // pred_check
    _
  $region19: #{freq_att_layer.1} parent=0 // pred_check_branch
    %19 = sbr.rel (0) target = $region21
  $region20: #{freq_att_layer.1} parent=0 // pred_region
    _
  $region21: #{freq_att_layer.1} parent=0 // pred_fallthru
    _
  %v20 = vld [vmem:[%s0] sm:$0xff]
  %v21 = vld [vmem:[%s0 + $0x8] sm:$0xff]
  %v22 = vld [vmem:[%s0 + $0x10] sm:$0xff]
  %v23 = vld [vmem:[%s0 + $0x18] sm:$0xff]
  %v24 = vld [vmem:[%s0 + $0x20] sm:$0xff]
  %v25 = vld [vmem:[%s0 + $0x28] sm:$0xff]
  %v26 = vld [vmem:[%s0 + $0x30] sm:$0xff]
  %v27 = vld [vmem:[%s0 + $0x38] sm:$0xff]
  %v28 = vld [vmem:[%s0 + $0x40] sm:$0xff]
  %v29 = vld [vmem:[%s0 + $0x48] sm:$0xff]
  %v30 = vld [vmem:[%s0 + $0x50] sm:$0xff]
  %v31 = vld [vmem:[%s0 + $0x58] sm:$0xff]
  %v32 = vld [vmem:[%s0 + $0x60] sm:$0xff]
  %v33 = vld [vmem:[%s0 + $0x68] sm:$0xff]
  %v34 = vld [vmem:[%s0 + $0x70] sm:$0xff]
  %v35 = vld [vmem:[%s0 + $0x78] sm:$0xff]
  %v36 = vld [vmem:[%s0 + $0x80] sm:$0xff]
  %v37 = vld [vmem:[%s0 + $0x88] sm:$0xff]
  %v38 = vld [vmem:[%s0 + $0x90] sm:$0xff]
  %v39 = vld [vmem:[%s0 + $0x98] sm:$0xff]
  %v40 = vld [vmem:[%s0 + $0xa0] sm:$0xff]
  %v41 = vld [vmem:[%s0 + $0xa8] sm:$0xff]
  %v42 = vld [vmem:[%s0 + $0xb0] sm:$0xff]
  %v43 = vld [vmem:[%s0 + $0xb8] sm:$0xff]
  %v44 = vld [vmem:[%s0 + $0xc0] sm:$0xff]
  %v45 = vld [vmem:[%s0 + $0xc8] sm:$0xff]
  %v46 = vld [vmem:[%s0 + $0xd0] sm:$0xff]
  %v47 = vld [vmem:[%s0 + $0xd8] sm:$0xff]
  %v48 = vld [vmem:[%s0 + $0xe0] sm:$0xff]
  %v49 = vld [vmem:[%s0 + $0xe8] sm:$0xff]
  %v50 = vld [vmem:[%s0 + $0xf0] sm:$0xff]
  %v51 = vld [vmem:[%s0 + $0xf8] sm:$0xff]
  %v52 = vld [vmem:[%s0 + $0x100] sm:$0xff]
  %v53 = vld [vmem:[%s0 + $0x108] sm:$0xff]
  %v54 = vld [vmem:[%s0 + $0x110] sm:$0xff]
  %v55 = vld [vmem:[%s0 + $0x118] sm:$0xff]
  %v56 = vld [vmem:[%s0 + $0x120] sm:$0xff]
  %v57 = vld [vmem:[%s0 + $0x128] sm:$0xff]
  %v58 = vld [vmem:[%s0 + $0x130] sm:$0xff]
  %v59 = vld [vmem:[%s0 + $0x138] sm:$0xff]
  %vm60 = vcmask 130048
  %v61 = vsel %vm60, %v20, 0.0
  %62 = vadd.xlane.f32.xlu0 %v61
  %v63 = vpop.xlane.xlu0 %62
  %v64 = vsel %vm60, %v21, 0.0
  %65 = vadd.xlane.f32.xlu0 %v64
  %v66 = vpop.xlane.xlu0 %65
  %v67 = vsel %vm60, %v22, 0.0
  %68 = vadd.xlane.f32.xlu0 %v67
  %v69 = vpop.xlane.xlu0 %68
  %v70 = vsel %vm60, %v23, 0.0
  %71 = vadd.xlane.f32.xlu0 %v70
  %v72 = vpop.xlane.xlu0 %71
  %v73 = vsel %vm60, %v24, 0.0
  %74 = vadd.xlane.f32.xlu0 %v73
  %v75 = vpop.xlane.xlu0 %74
  %v76 = vsel %vm60, %v25, 0.0
  %77 = vadd.xlane.f32.xlu0 %v76
  %v78 = vpop.xlane.xlu0 %77
  %v79 = vsel %vm60, %v26, 0.0
  %80 = vadd.xlane.f32.xlu0 %v79
  %v81 = vpop.xlane.xlu0 %80
  %v82 = vsel %vm60, %v27, 0.0
  %83 = vadd.xlane.f32.xlu0 %v82
  %v84 = vpop.xlane.xlu0 %83
  %v85 = vsel %vm60, %v28, 0.0
  %86 = vadd.xlane.f32.xlu0 %v85
  %v87 = vpop.xlane.xlu0 %86
  %v88 = vsel %vm60, %v29, 0.0
  %89 = vadd.xlane.f32.xlu0 %v88
  %v90 = vpop.xlane.xlu0 %89
  %v91 = vsel %vm60, %v30, 0.0
  %92 = vadd.xlane.f32.xlu0 %v91
  %v93 = vpop.xlane.xlu0 %92
  %v94 = vsel %vm60, %v31, 0.0
  %95 = vadd.xlane.f32.xlu0 %v94
  %v96 = vpop.xlane.xlu0 %95
  %v97 = vsel %vm60, %v32, 0.0
  %98 = vadd.xlane.f32.xlu0 %v97
  %v99 = vpop.xlane.xlu0 %98
  %v100 = vsel %vm60, %v33, 0.0
  %101 = vadd.xlane.f32.xlu0 %v100
  %v102 = vpop.xlane.xlu0 %101
  %v103 = vsel %vm60, %v34, 0.0
  %104 = vadd.xlane.f32.xlu0 %v103
  %v105 = vpop.xlane.xlu0 %104
  %v106 = vsel %vm60, %v35, 0.0
  %107 = vadd.xlane.f32.xlu0 %v106
  %v108 = vpop.xlane.xlu0 %107
  %v109 = vsel %vm60, %v36, 0.0
  %110 = vadd.xlane.f32.xlu0 %v109
  %v111 = vpop.xlane.xlu0 %110
  %v112 = vsel %vm60, %v37, 0.0
  %113 = vadd.xlane.f32.xlu0 %v112
  %v114 = vpop.xlane.xlu0 %113
  %v115 = vsel %vm60, %v38, 0.0
  %116 = vadd.xlane.f32.xlu0 %v115
  %v117 = vpop.xlane.xlu0 %116
  %v118 = vsel %vm60, %v39, 0.0
  %119 = vadd.xlane.f32.xlu0 %v118
  %v120 = vpop.xlane.xlu0 %119
  %v121 = vsel %vm60, %v40, 0.0
  %122 = vadd.xlane.f32.xlu0 %v121
  %v123 = vpop.xlane.xlu0 %122
  %v124 = vsel %vm60, %v41, 0.0
  %125 = vadd.xlane.f32.xlu0 %v124
  %v126 = vpop.xlane.xlu0 %125
  %v127 = vsel %vm60, %v42, 0.0
  %128 = vadd.xlane.f32.xlu0 %v127
  %v129 = vpop.xlane.xlu0 %128
  %v130 = vsel %vm60, %v43, 0.0
  %131 = vadd.xlane.f32.xlu0 %v130
  %v132 = vpop.xlane.xlu0 %131
  %v133 = vsel %vm60, %v44, 0.0
  %134 = vadd.xlane.f32.xlu0 %v133
  %v135 = vpop.xlane.xlu0 %134
  %v136 = vsel %vm60, %v45, 0.0
  %137 = vadd.xlane.f32.xlu0 %v136
  %v138 = vpop.xlane.xlu0 %137
  %v139 = vsel %vm60, %v46, 0.0
  %140 = vadd.xlane.f32.xlu0 %v139
  %v141 = vpop.xlane.xlu0 %140
  %v142 = vsel %vm60, %v47, 0.0
  %143 = vadd.xlane.f32.xlu0 %v142
  %v144 = vpop.xlane.xlu0 %143
  %v145 = vsel %vm60, %v48, 0.0
  %146 = vadd.xlane.f32.xlu0 %v145
  %v147 = vpop.xlane.xlu0 %146
  %v148 = vsel %vm60, %v49, 0.0
  %149 = vadd.xlane.f32.xlu0 %v148
  %v150 = vpop.xlane.xlu0 %149
  %v151 = vsel %vm60, %v50, 0.0
  %152 = vadd.xlane.f32.xlu0 %v151
  %v153 = vpop.xlane.xlu0 %152
  %v154 = vsel %vm60, %v51, 0.0
  %155 = vadd.xlane.f32.xlu0 %v154
  %v156 = vpop.xlane.xlu0 %155
  %v157 = vsel %vm60, %v52, 0.0
  %158 = vadd.xlane.f32.xlu0 %v157
  %v159 = vpop.xlane.xlu0 %158
  %v160 = vsel %vm60, %v53, 0.0
  %161 = vadd.xlane.f32.xlu0 %v160
  %v162 = vpop.xlane.xlu0 %161
  %v163 = vsel %vm60, %v54, 0.0
  %164 = vadd.xlane.f32.xlu0 %v163
  %v165 = vpop.xlane.xlu0 %164
  %v166 = vsel %vm60, %v55, 0.0
  %167 = vadd.xlane.f32.xlu0 %v166
  %v168 = vpop.xlane.xlu0 %167
  %v169 = vsel %vm60, %v56, 0.0
  %170 = vadd.xlane.f32.xlu0 %v169
  %v171 = vpop.xlane.xlu0 %170
  %v172 = vsel %vm60, %v57, 0.0
  %173 = vadd.xlane.f32.xlu0 %v172
  %v174 = vpop.xlane.xlu0 %173
  %v175 = vsel %vm60, %v58, 0.0
  %176 = vadd.xlane.f32.xlu0 %v175
  %v177 = vpop.xlane.xlu0 %176
  %v178 = vsel %vm60, %v59, 0.0
  %179 = vadd.xlane.f32.xlu0 %v178
  %v180 = vpop.xlane.xlu0 %179
  %v181 = vmul.f32 %v63, 0.0625
  %v182 = vmul.f32 %v66, 0.0625
  %v183 = vmul.f32 %v69, 0.0625
  %v184 = vmul.f32 %v72, 0.0625
  %v185 = vmul.f32 %v75, 0.0625
  %v186 = vmul.f32 %v78, 0.0625
  %v187 = vmul.f32 %v81, 0.0625
  %v188 = vmul.f32 %v84, 0.0625
  %v189 = vmul.f32 %v87, 0.0625
  %v190 = vmul.f32 %v90, 0.0625
  %v191 = vmul.f32 %v93, 0.0625
  %v192 = vmul.f32 %v96, 0.0625
  %v193 = vmul.f32 %v99, 0.0625
  %v194 = vmul.f32 %v102, 0.0625
  %v195 = vmul.f32 %v105, 0.0625
  %v196 = vmul.f32 %v108, 0.0625
  %v197 = vmul.f32 %v111, 0.0625
  %v198 = vmul.f32 %v114, 0.0625
  %v199 = vmul.f32 %v117, 0.0625
  %v200 = vmul.f32 %v120, 0.0625
  %v201 = vmul.f32 %v123, 0.0625
  %v202 = vmul.f32 %v126, 0.0625
  %v203 = vmul.f32 %v129, 0.0625
  %v204 = vmul.f32 %v132, 0.0625
  %v205 = vmul.f32 %v135, 0.0625
  %v206 = vmul.f32 %v138, 0.0625
  %v207 = vmul.f32 %v141, 0.0625
  %v208 = vmul.f32 %v144, 0.0625
  %v209 = vmul.f32 %v147, 0.0625
  %v210 = vmul.f32 %v150, 0.0625
  %v211 = vmul.f32 %v153, 0.0625
  %v212 = vmul.f32 %v156, 0.0625
  %v213 = vmul.f32 %v159, 0.0625
  %v214 = vmul.f32 %v162, 0.0625
  %v215 = vmul.f32 %v165, 0.0625
  %v216 = vmul.f32 %v168, 0.0625
  %v217 = vmul.f32 %v171, 0.0625
  %v218 = vmul.f32 %v174, 0.0625
  %v219 = vmul.f32 %v177, 0.0625
  %v220 = vmul.f32 %v180, 0.0625
  %v221 = vld [vmem:[%s1] sm:$0xff]
  %v222 = vld [vmem:[%s1 + $0x8] sm:$0xff]
  %v223 = vld [vmem:[%s1 + $0x10] sm:$0xff]
  %v224 = vld [vmem:[%s1 + $0x18] sm:$0xff]
  %v225 = vld [vmem:[%s1 + $0x20] sm:$0xff]
  %v226 = vld [vmem:[%s1 + $0x28] sm:$0xff]
  %v227 = vld [vmem:[%s1 + $0x30] sm:$0xff]
  %v228 = vld [vmem:[%s1 + $0x38] sm:$0xff]
  %v229 = vld [vmem:[%s1 + $0x40] sm:$0xff]
  %v230 = vld [vmem:[%s1 + $0x48] sm:$0xff]
  %v231 = vld [vmem:[%s1 + $0x50] sm:$0xff]
  %v232 = vld [vmem:[%s1 + $0x58] sm:$0xff]
  %v233 = vld [vmem:[%s1 + $0x60] sm:$0xff]
  %v234 = vld [vmem:[%s1 + $0x68] sm:$0xff]
  %v235 = vld [vmem:[%s1 + $0x70] sm:$0xff]
  %v236 = vld [vmem:[%s1 + $0x78] sm:$0xff]
  %v237 = vld [vmem:[%s1 + $0x80] sm:$0xff]
  %v238 = vld [vmem:[%s1 + $0x88] sm:$0xff]
  %v239 = vld [vmem:[%s1 + $0x90] sm:$0xff]
  %v240 = vld [vmem:[%s1 + $0x98] sm:$0xff]
  %v241 = vld [vmem:[%s2] sm:$0x1]
  %v243 = vlaneseq
  %v244 = vshrl.u32 %v243, 7
  %v245 = vsub.s32 0, %v244
  %v246 = vrot.slane %v241, %v245
  %v288 = vlaneseq
  %v289 = vand.u32 %v288, 127
  %v290 = vlaneseq
  %v291 = vshrl.u32 %v290, 7
  %v292 = vsub.s32 %v289, %v291
  %v293 = vrot.slane %v181, %v292
  %v294 = vadd.s32 %v289, 4294967288
  %v295 = vlaneseq
  %v296 = vshrl.u32 %v295, 7
  %v297 = vsub.s32 %v294, %v296
  %v298 = vrot.slane %v182, %v297
  %vm299 = vcmask 130112
  %v300 = vsel %vm299, %v298, %v293
  %v301 = vadd.s32 %v289, 4294967280
  %v302 = vlaneseq
  %v303 = vshrl.u32 %v302, 7
  %v304 = vsub.s32 %v301, %v303
  %v305 = vrot.slane %v183, %v304
  %vm306 = vcmask 195712
  %v307 = vsel %vm306, %v305, %v300
  %v308 = vadd.s32 %v289, 4294967272
  %v309 = vlaneseq
  %v310 = vshrl.u32 %v309, 7
  %v311 = vsub.s32 %v308, %v310
  %v312 = vrot.slane %v184, %v311
  %vm313 = vcmask 261312
  %v314 = vsel %vm313, %v312, %v307
  %v315 = vadd.s32 %v289, 4294967264
  %v316 = vlaneseq
  %v317 = vshrl.u32 %v316, 7
  %v318 = vsub.s32 %v315, %v317
  %v319 = vrot.slane %v185, %v318
  %vm320 = vcmask 326912
  %v321 = vsel %vm320, %v319, %v314
  %v322 = vadd.s32 %v289, 4294967256
  %v323 = vlaneseq
  %v324 = vshrl.u32 %v323, 7
  %v325 = vsub.s32 %v322, %v324
  %v326 = vrot.slane %v186, %v325
  %vm327 = vcmask 392512
  %v328 = vsel %vm327, %v326, %v321
  %v329 = vadd.s32 %v289, 4294967248
  %v330 = vlaneseq
  %v331 = vshrl.u32 %v330, 7
  %v332 = vsub.s32 %v329, %v331
  %v333 = vrot.slane %v187, %v332
  %vm334 = vcmask 458112
  %v335 = vsel %vm334, %v333, %v328
  %v336 = vadd.s32 %v289, 4294967240
  %v337 = vlaneseq
  %v338 = vshrl.u32 %v337, 7
  %v339 = vsub.s32 %v336, %v338
  %v340 = vrot.slane %v188, %v339
  %vm341 = vcmask 523712
  %v342 = vsel %vm341, %v340, %v335
  %v343 = vadd.s32 %v289, 4294967232
  %v344 = vlaneseq
  %v345 = vshrl.u32 %v344, 7
  %v346 = vsub.s32 %v343, %v345
  %v347 = vrot.slane %v189, %v346
  %vm348 = vcmask 589312
  %v349 = vsel %vm348, %v347, %v342
  %v350 = vadd.s32 %v289, 4294967224
  %v351 = vlaneseq
  %v352 = vshrl.u32 %v351, 7
  %v353 = vsub.s32 %v350, %v352
  %v354 = vrot.slane %v190, %v353
  %vm355 = vcmask 654912
  %v356 = vsel %vm355, %v354, %v349
  %v357 = vadd.s32 %v289, 4294967216
  %v358 = vlaneseq
  %v359 = vshrl.u32 %v358, 7
  %v360 = vsub.s32 %v357, %v359
  %v361 = vrot.slane %v191, %v360
  %vm362 = vcmask 720512
  %v363 = vsel %vm362, %v361, %v356
  %v364 = vadd.s32 %v289, 4294967208
  %v365 = vlaneseq
  %v366 = vshrl.u32 %v365, 7
  %v367 = vsub.s32 %v364, %v366
  %v368 = vrot.slane %v192, %v367
  %vm369 = vcmask 786112
  %v370 = vsel %vm369, %v368, %v363
  %v371 = vadd.s32 %v289, 4294967200
  %v372 = vlaneseq
  %v373 = vshrl.u32 %v372, 7
  %v374 = vsub.s32 %v371, %v373
  %v375 = vrot.slane %v193, %v374
  %vm376 = vcmask 851712
  %v377 = vsel %vm376, %v375, %v370
  %v378 = vadd.s32 %v289, 4294967192
  %v379 = vlaneseq
  %v380 = vshrl.u32 %v379, 7
  %v381 = vsub.s32 %v378, %v380
  %v382 = vrot.slane %v194, %v381
  %vm383 = vcmask 917312
  %v384 = vsel %vm383, %v382, %v377
  %v385 = vadd.s32 %v289, 4294967184
  %v386 = vlaneseq
  %v387 = vshrl.u32 %v386, 7
  %v388 = vsub.s32 %v385, %v387
  %v389 = vrot.slane %v195, %v388
  %vm390 = vcmask 982912
  %v391 = vsel %vm390, %v389, %v384
  %v392 = vadd.s32 %v289, 4294967176
  %v393 = vlaneseq
  %v394 = vshrl.u32 %v393, 7
  %v395 = vsub.s32 %v392, %v394
  %v396 = vrot.slane %v196, %v395
  %vm397 = vcmask 1048512
  %v398 = vsel %vm397, %v396, %v391
  %v399 = vlaneseq
  %v400 = vshrl.u32 %v399, 7
  %v401 = vsub.s32 %v289, %v400
  %v402 = vrot.slane %v197, %v401
  %v403 = vlaneseq
  %v404 = vshrl.u32 %v403, 7
  %v405 = vsub.s32 %v294, %v404
  %v406 = vrot.slane %v198, %v405
  %v407 = vsel %vm299, %v406, %v402
  %v408 = vlaneseq
  %v409 = vshrl.u32 %v408, 7
  %v410 = vsub.s32 %v301, %v409
  %v411 = vrot.slane %v199, %v410
  %v412 = vsel %vm306, %v411, %v407
  %v413 = vlaneseq
  %v414 = vshrl.u32 %v413, 7
  %v415 = vsub.s32 %v308, %v414
  %v416 = vrot.slane %v200, %v415
  %v417 = vsel %vm313, %v416, %v412
  %v418 = vlaneseq
  %v419 = vshrl.u32 %v418, 7
  %v420 = vsub.s32 %v289, %v419
  %v421 = vrot.slane %v201, %v420
  %v422 = vlaneseq
  %v423 = vshrl.u32 %v422, 7
  %v424 = vsub.s32 %v294, %v423
  %v425 = vrot.slane %v202, %v424
  %v426 = vsel %vm299, %v425, %v421
  %v427 = vlaneseq
  %v428 = vshrl.u32 %v427, 7
  %v429 = vsub.s32 %v301, %v428
  %v430 = vrot.slane %v203, %v429
  %v431 = vsel %vm306, %v430, %v426
  %v432 = vlaneseq
  %v433 = vshrl.u32 %v432, 7
  %v434 = vsub.s32 %v308, %v433
  %v435 = vrot.slane %v204, %v434
  %v436 = vsel %vm313, %v435, %v431
  %v437 = vlaneseq
  %v438 = vshrl.u32 %v437, 7
  %v439 = vsub.s32 %v315, %v438
  %v440 = vrot.slane %v205, %v439
  %v441 = vsel %vm320, %v440, %v436
  %v442 = vlaneseq
  %v443 = vshrl.u32 %v442, 7
  %v444 = vsub.s32 %v322, %v443
  %v445 = vrot.slane %v206, %v444
  %v446 = vsel %vm327, %v445, %v441
  %v447 = vlaneseq
  %v448 = vshrl.u32 %v447, 7
  %v449 = vsub.s32 %v329, %v448
  %v450 = vrot.slane %v207, %v449
  %v451 = vsel %vm334, %v450, %v446
  %v452 = vlaneseq
  %v453 = vshrl.u32 %v452, 7
  %v454 = vsub.s32 %v336, %v453
  %v455 = vrot.slane %v208, %v454
  %v456 = vsel %vm341, %v455, %v451
  %v457 = vlaneseq
  %v458 = vshrl.u32 %v457, 7
  %v459 = vsub.s32 %v343, %v458
  %v460 = vrot.slane %v209, %v459
  %v461 = vsel %vm348, %v460, %v456
  %v462 = vlaneseq
  %v463 = vshrl.u32 %v462, 7
  %v464 = vsub.s32 %v350, %v463
  %v465 = vrot.slane %v210, %v464
  %v466 = vsel %vm355, %v465, %v461
  %v467 = vlaneseq
  %v468 = vshrl.u32 %v467, 7
  %v469 = vsub.s32 %v357, %v468
  %v470 = vrot.slane %v211, %v469
  %v471 = vsel %vm362, %v470, %v466
  %v472 = vlaneseq
  %v473 = vshrl.u32 %v472, 7
  %v474 = vsub.s32 %v364, %v473
  %v475 = vrot.slane %v212, %v474
  %v476 = vsel %vm369, %v475, %v471
  %v477 = vlaneseq
  %v478 = vshrl.u32 %v477, 7
  %v479 = vsub.s32 %v371, %v478
  %v480 = vrot.slane %v213, %v479
  %v481 = vsel %vm376, %v480, %v476
  %v482 = vlaneseq
  %v483 = vshrl.u32 %v482, 7
  %v484 = vsub.s32 %v378, %v483
  %v485 = vrot.slane %v214, %v484
  %v486 = vsel %vm383, %v485, %v481
  %v487 = vlaneseq
  %v488 = vshrl.u32 %v487, 7
  %v489 = vsub.s32 %v385, %v488
  %v490 = vrot.slane %v215, %v489
  %v491 = vsel %vm390, %v490, %v486
  %v492 = vlaneseq
  %v493 = vshrl.u32 %v492, 7
  %v494 = vsub.s32 %v392, %v493
  %v495 = vrot.slane %v216, %v494
  %v496 = vsel %vm397, %v495, %v491
  %v497 = vlaneseq
  %v498 = vshrl.u32 %v497, 7
  %v499 = vsub.s32 %v289, %v498
  %v500 = vrot.slane %v217, %v499
  %v501 = vlaneseq
  %v502 = vshrl.u32 %v501, 7
  %v503 = vsub.s32 %v294, %v502
  %v504 = vrot.slane %v218, %v503
  %v505 = vsel %vm299, %v504, %v500
  %v506 = vlaneseq
  %v507 = vshrl.u32 %v506, 7
  %v508 = vsub.s32 %v301, %v507
  %v509 = vrot.slane %v219, %v508
  %v510 = vsel %vm306, %v509, %v505
  %v511 = vlaneseq
  %v512 = vshrl.u32 %v511, 7
  %v513 = vsub.s32 %v308, %v512
  %v514 = vrot.slane %v220, %v513
  %v515 = vsel %vm313, %v514, %v510
  %vm516 = vcmask 1041409
  %v517 = vsel %vm516, %v496, %v398
  %v518 = vsel %vm516, %v515, %v417
  %vm520 = vcmask 261120
  %v521 = vsel %vm520, %v518, 0
  %523 = vmatprep.subr.mxu0 0.0
  %524 = vmatpush1.msra.mxu0 %v236
  %525 = vmatprep.subr.mxu0 0.0
  %526 = vmatpush1.msra.mxu0 %v235
  %527 = vmatprep.subr.mxu0 0.0
  %528 = vmatpush1.msra.mxu0 %v234
  %529 = vmatprep.subr.mxu0 0.0
  %530 = vmatpush1.msra.mxu0 %v233
  %531 = vmatprep.subr.mxu0 0.0
  %532 = vmatpush1.msra.mxu0 %v232
  %533 = vmatprep.subr.mxu0 0.0
  %534 = vmatpush1.msra.mxu0 %v231
  %535 = vmatprep.subr.mxu0 0.0
  %536 = vmatpush1.msra.mxu0 %v230
  %537 = vmatprep.subr.mxu0 0.0
  %538 = vmatpush1.msra.mxu0 %v229
  %539 = vmatprep.subr.mxu0 0.0
  %540 = vmatpush1.msra.mxu0 %v228
  %541 = vmatprep.subr.mxu0 0.0
  %542 = vmatpush1.msra.mxu0 %v227
  %543 = vmatprep.subr.mxu0 0.0
  %544 = vmatpush1.msra.mxu0 %v226
  %545 = vmatprep.subr.mxu0 0.0
  %546 = vmatpush1.msra.mxu0 %v225
  %547 = vmatprep.subr.mxu0 0.0
  %548 = vmatpush1.msra.mxu0 %v224
  %549 = vmatprep.subr.mxu0 0.0
  %550 = vmatpush1.msra.mxu0 %v223
  %551 = vmatprep.subr.mxu0 0.0
  %552 = vmatpush1.msra.mxu0 %v222
  %553 = vmatprep.subr.mxu0 0.0
  %554 = vmatpush1.msra.mxu0 %v221
  %555 = vmatprep.subr.mxu0 0.0
  %556 = vmatpush2.msra.mxu0 0.0
  %557 = vmatprep.subr.mxu0 0.0
  %558 = vmatpush2.msra.mxu0 0.0
  %559 = vmatprep.subr.mxu0 0.0
  %560 = vmatpush2.msra.mxu0 0.0
  %561 = vmatprep.subr.mxu0 0.0
  %562 = vmatpush2.msra.mxu0 0.0
  %563 = vmatprep.subr.mxu0 0.0
  %564 = vmatpush2.msra.mxu0 0.0
  %565 = vmatprep.subr.mxu0 0.0
  %566 = vmatpush2.msra.mxu0 0.0
  %567 = vmatprep.subr.mxu0 0.0
  %568 = vmatpush2.msra.mxu0 0.0
  %569 = vmatprep.subr.mxu0 0.0
  %570 = vmatpush2.msra.mxu0 0.0
  %571 = vmatprep.subr.mxu0 0.0
  %572 = vmatpush2.msra.mxu0 0.0
  %573 = vmatprep.subr.mxu0 0.0
  %574 = vmatpush2.msra.mxu0 0.0
  %575 = vmatprep.subr.mxu0 0.0
  %576 = vmatpush2.msra.mxu0 0.0
  %577 = vmatprep.subr.mxu0 0.0
  %578 = vmatpush2.msra.mxu0 0.0
  %579 = vmatprep.subr.mxu0 0.0
  %580 = vmatpush2.msra.mxu0 %v240
  %581 = vmatprep.subr.mxu0 0.0
  %582 = vmatpush2.msra.mxu0 %v239
  %583 = vmatprep.subr.mxu0 0.0
  %584 = vmatpush2.msra.mxu0 %v238
  %585 = vmatprep.subr.mxu0 0.0
  %586 = vmatpush2.msra.mxu0 %v237
  %587 = vmatprep.mubr.f32.mxu0 %v521
  %588 = vmatmul.mubr.f32.gmra.mxu0 %v517
  %v589 = vpop.f32.mrf.mxu0
  %v590 = vadd.f32 %v246, %v589
  %v591 = vpop.f32.mrf.mxu0
  %592 = vdwg.mxu0
  %v593 = vmax.f32 %v590, 0.0
  %v594 = vld [vmem:[%s3] sm:$0xff]
  %v595 = vld [vmem:[%s3 + $0x8] sm:$0xff]
  %v596 = vld [vmem:[%s4] sm:$0x3]
  %v598 = vlaneseq
  %v599 = vshrl.u32 %v598, 7
  %v600 = vsub.s32 0, %v599
  %v601 = vrot.slane %v596, %v600
  %v602 = vlaneseq
  %v603 = vshrl.u32 %v602, 7
  %v604 = vsub.s32 1, %v603
  %v605 = vrot.slane %v596, %v604
  %vm608 = vcmask 64512
  %v610 = vsel %vm608, %v593, 0
  %612 = vmatprep.subr.mxu0 0.0
  %613 = vmatpush1.msra.mxu0 0.0
  %614 = vmatprep.subr.mxu0 0.0
  %615 = vmatpush1.msra.mxu0 0.0
  %616 = vmatprep.subr.mxu0 0.0
  %617 = vmatpush1.msra.mxu0 0.0
  %618 = vmatprep.subr.mxu0 0.0
  %619 = vmatpush1.msra.mxu0 0.0
  %620 = vmatprep.subr.mxu0 0.0
  %621 = vmatpush1.msra.mxu0 0.0
  %622 = vmatprep.subr.mxu0 0.0
  %623 = vmatpush1.msra.mxu0 0.0
  %624 = vmatprep.subr.mxu0 0.0
  %625 = vmatpush1.msra.mxu0 0.0
  %626 = vmatprep.subr.mxu0 0.0
  %627 = vmatpush1.msra.mxu0 0.0
  %628 = vmatprep.subr.mxu0 0.0
  %629 = vmatpush1.msra.mxu0 0.0
  %630 = vmatprep.subr.mxu0 0.0
  %631 = vmatpush1.msra.mxu0 0.0
  %632 = vmatprep.subr.mxu0 0.0
  %633 = vmatpush1.msra.mxu0 0.0
  %634 = vmatprep.subr.mxu0 0.0
  %635 = vmatpush1.msra.mxu0 0.0
  %636 = vmatprep.subr.mxu0 0.0
  %637 = vmatpush1.msra.mxu0 0.0
  %638 = vmatprep.subr.mxu0 0.0
  %639 = vmatpush1.msra.mxu0 0.0
  %640 = vmatprep.subr.mxu0 0.0
  %641 = vmatpush1.msra.mxu0 0.0
  %642 = vmatprep.subr.mxu0 %v595
  %643 = vmatpush1.msra.mxu0 %v594
  %644 = vmatprep.subr.mxu0 0.0
  %645 = vmatpush2.msra.mxu0 0.0
  %646 = vmatprep.subr.mxu0 0.0
  %647 = vmatpush2.msra.mxu0 0.0
  %648 = vmatprep.subr.mxu0 0.0
  %649 = vmatpush2.msra.mxu0 0.0
  %650 = vmatprep.subr.mxu0 0.0
  %651 = vmatpush2.msra.mxu0 0.0
  %652 = vmatprep.subr.mxu0 0.0
  %653 = vmatpush2.msra.mxu0 0.0
  %654 = vmatprep.subr.mxu0 0.0
  %655 = vmatpush2.msra.mxu0 0.0
  %656 = vmatprep.subr.mxu0 0.0
  %657 = vmatpush2.msra.mxu0 0.0
  %658 = vmatprep.subr.mxu0 0.0
  %659 = vmatpush2.msra.mxu0 0.0
  %660 = vmatprep.subr.mxu0 0.0
  %661 = vmatpush2.msra.mxu0 0.0
  %662 = vmatprep.subr.mxu0 0.0
  %663 = vmatpush2.msra.mxu0 0.0
  %664 = vmatprep.subr.mxu0 0.0
  %665 = vmatpush2.msra.mxu0 0.0
  %666 = vmatprep.subr.mxu0 0.0
  %667 = vmatpush2.msra.mxu0 0.0
  %668 = vmatprep.subr.mxu0 0.0
  %669 = vmatpush2.msra.mxu0 0.0
  %670 = vmatprep.subr.mxu0 0.0
  %671 = vmatpush2.msra.mxu0 0.0
  %672 = vmatprep.subr.mxu0 0.0
  %673 = vmatpush2.msra.mxu0 0.0
  %674 = vmatprep.subr.mxu0 0.0
  %675 = vmatpush2.msra.mxu0 0.0
  %676 = vmatprep.mubr.f32.mxu0 0.0
  %677 = vmatmul.mubr.f32.gmra.mxu0 %v610
  %v678 = vpop.f32.mrf.mxu0
  %v679 = vadd.f32 %v601, %v678
  %v680 = vpop.f32.mrf.mxu0
  %v681 = vadd.f32 %v605, %v680
  %682 = vdwg.mxu0
  %v683 = vxor.u32 %v679, 2147483648
  %v684 = vxor.u32 %v681, 2147483648
  %v685 = vmul.f32 %v683, 1.442695
  %v686 = vpow.pop %v685
  %v687 = vmul.f32 %v684, 1.442695
  %v688 = vpow.pop %v687
  %v689 = vadd.f32 %v686, 1.0
  %v690 = vadd.f32 %v688, 1.0
  %v691 = vrcp.pop %v689
  %v692 = vmul.f32 1.0, %v691
  %v693 = vrcp.pop %v690
  %v694 = vmul.f32 1.0, %v693
  %v695 = vlaneseq
  %v696 = vshrl.u32 %v695, 7
  %v697 = vsub.s32 0, %v696
  %v698 = vrot.slane %v692, %v697
  %700 = vbcast.lane.b32.xlu0 %v698, 256
  %v701 = vpop.permute.xlu0 %700
  %s703 = sor.u32 256, 8
  %704 = vbcast.lane.b32.xlu0 %v698, %s703
  %v705 = vpop.permute.xlu0 %704
  %s707 = sor.u32 256, 16
  %708 = vbcast.lane.b32.xlu0 %v698, %s707
  %v709 = vpop.permute.xlu0 %708
  %s711 = sor.u32 256, 24
  %712 = vbcast.lane.b32.xlu0 %v698, %s711
  %v713 = vpop.permute.xlu0 %712
  %s715 = sor.u32 256, 32
  %716 = vbcast.lane.b32.xlu0 %v698, %s715
  %v717 = vpop.permute.xlu0 %716
  %s719 = sor.u32 256, 40
  %720 = vbcast.lane.b32.xlu0 %v698, %s719
  %v721 = vpop.permute.xlu0 %720
  %s723 = sor.u32 256, 48
  %724 = vbcast.lane.b32.xlu0 %v698, %s723
  %v725 = vpop.permute.xlu0 %724
  %s727 = sor.u32 256, 56
  %728 = vbcast.lane.b32.xlu0 %v698, %s727
  %v729 = vpop.permute.xlu0 %728
  %s731 = sor.u32 256, 64
  %732 = vbcast.lane.b32.xlu0 %v698, %s731
  %v733 = vpop.permute.xlu0 %732
  %s735 = sor.u32 256, 72
  %736 = vbcast.lane.b32.xlu0 %v698, %s735
  %v737 = vpop.permute.xlu0 %736
  %s739 = sor.u32 256, 80
  %740 = vbcast.lane.b32.xlu0 %v698, %s739
  %v741 = vpop.permute.xlu0 %740
  %s743 = sor.u32 256, 88
  %744 = vbcast.lane.b32.xlu0 %v698, %s743
  %v745 = vpop.permute.xlu0 %744
  %s747 = sor.u32 256, 96
  %748 = vbcast.lane.b32.xlu0 %v698, %s747
  %v749 = vpop.permute.xlu0 %748
  %s751 = sor.u32 256, 104
  %752 = vbcast.lane.b32.xlu0 %v698, %s751
  %v753 = vpop.permute.xlu0 %752
  %s755 = sor.u32 256, 112
  %756 = vbcast.lane.b32.xlu0 %v698, %s755
  %v757 = vpop.permute.xlu0 %756
  %s759 = sor.u32 256, 120
  %760 = vbcast.lane.b32.xlu0 %v698, %s759
  %v761 = vpop.permute.xlu0 %760
  %v762 = vlaneseq
  %v763 = vshrl.u32 %v762, 7
  %v764 = vsub.s32 0, %v763
  %v765 = vrot.slane %v694, %v764
  %767 = vbcast.lane.b32.xlu0 %v765, 256
  %v768 = vpop.permute.xlu0 %767
  %s770 = sor.u32 256, 8
  %771 = vbcast.lane.b32.xlu0 %v765, %s770
  %v772 = vpop.permute.xlu0 %771
  %s774 = sor.u32 256, 16
  %775 = vbcast.lane.b32.xlu0 %v765, %s774
  %v776 = vpop.permute.xlu0 %775
  %s778 = sor.u32 256, 24
  %779 = vbcast.lane.b32.xlu0 %v765, %s778
  %v780 = vpop.permute.xlu0 %779
  %v781 = vlaneseq
  %v782 = vshrl.u32 %v781, 7
  %v783 = vsub.s32 1, %v782
  %v784 = vrot.slane %v692, %v783
  %786 = vbcast.lane.b32.xlu0 %v784, 256
  %v787 = vpop.permute.xlu0 %786
  %s789 = sor.u32 256, 8
  %790 = vbcast.lane.b32.xlu0 %v784, %s789
  %v791 = vpop.permute.xlu0 %790
  %s793 = sor.u32 256, 16
  %794 = vbcast.lane.b32.xlu0 %v784, %s793
  %v795 = vpop.permute.xlu0 %794
  %s797 = sor.u32 256, 24
  %798 = vbcast.lane.b32.xlu0 %v784, %s797
  %v799 = vpop.permute.xlu0 %798
  %s801 = sor.u32 256, 32
  %802 = vbcast.lane.b32.xlu0 %v784, %s801
  %v803 = vpop.permute.xlu0 %802
  %s805 = sor.u32 256, 40
  %806 = vbcast.lane.b32.xlu0 %v784, %s805
  %v807 = vpop.permute.xlu0 %806
  %s809 = sor.u32 256, 48
  %810 = vbcast.lane.b32.xlu0 %v784, %s809
  %v811 = vpop.permute.xlu0 %810
  %s813 = sor.u32 256, 56
  %814 = vbcast.lane.b32.xlu0 %v784, %s813
  %v815 = vpop.permute.xlu0 %814
  %s817 = sor.u32 256, 64
  %818 = vbcast.lane.b32.xlu0 %v784, %s817
  %v819 = vpop.permute.xlu0 %818
  %s821 = sor.u32 256, 72
  %822 = vbcast.lane.b32.xlu0 %v784, %s821
  %v823 = vpop.permute.xlu0 %822
  %s825 = sor.u32 256, 80
  %826 = vbcast.lane.b32.xlu0 %v784, %s825
  %v827 = vpop.permute.xlu0 %826
  %s829 = sor.u32 256, 88
  %830 = vbcast.lane.b32.xlu0 %v784, %s829
  %v831 = vpop.permute.xlu0 %830
  %s833 = sor.u32 256, 96
  %834 = vbcast.lane.b32.xlu0 %v784, %s833
  %v835 = vpop.permute.xlu0 %834
  %s837 = sor.u32 256, 104
  %838 = vbcast.lane.b32.xlu0 %v784, %s837
  %v839 = vpop.permute.xlu0 %838
  %s841 = sor.u32 256, 112
  %842 = vbcast.lane.b32.xlu0 %v784, %s841
  %v843 = vpop.permute.xlu0 %842
  %s845 = sor.u32 256, 120
  %846 = vbcast.lane.b32.xlu0 %v784, %s845
  %v847 = vpop.permute.xlu0 %846
  %v848 = vlaneseq
  %v849 = vshrl.u32 %v848, 7
  %v850 = vsub.s32 1, %v849
  %v851 = vrot.slane %v694, %v850
  %853 = vbcast.lane.b32.xlu0 %v851, 256
  %v854 = vpop.permute.xlu0 %853
  %s856 = sor.u32 256, 8
  %857 = vbcast.lane.b32.xlu0 %v851, %s856
  %v858 = vpop.permute.xlu0 %857
  %s860 = sor.u32 256, 16
  %861 = vbcast.lane.b32.xlu0 %v851, %s860
  %v862 = vpop.permute.xlu0 %861
  %s864 = sor.u32 256, 24
  %865 = vbcast.lane.b32.xlu0 %v851, %s864
  %v866 = vpop.permute.xlu0 %865
  %v867 = vmul.f32 %v20, %v701
  %v868 = vmul.f32 %v21, %v705
  %v869 = vmul.f32 %v22, %v709
  %v870 = vmul.f32 %v23, %v713
  %v871 = vmul.f32 %v24, %v717
  %v872 = vmul.f32 %v25, %v721
  %v873 = vmul.f32 %v26, %v725
  %v874 = vmul.f32 %v27, %v729
  %v875 = vmul.f32 %v28, %v733
  %v876 = vmul.f32 %v29, %v737
  %v877 = vmul.f32 %v30, %v741
  %v878 = vmul.f32 %v31, %v745
  %v879 = vmul.f32 %v32, %v749
  %v880 = vmul.f32 %v33, %v753
  %v881 = vmul.f32 %v34, %v757
  %v882 = vmul.f32 %v35, %v761
  %v883 = vmul.f32 %v36, %v768
  %v884 = vmul.f32 %v37, %v772
  %v885 = vmul.f32 %v38, %v776
  %v886 = vmul.f32 %v39, %v780
  %v887 = vmul.f32 %v40, %v787
  %v888 = vmul.f32 %v41, %v791
  %v889 = vmul.f32 %v42, %v795
  %v890 = vmul.f32 %v43, %v799
  %v891 = vmul.f32 %v44, %v803
  %v892 = vmul.f32 %v45, %v807
  %v893 = vmul.f32 %v46, %v811
  %v894 = vmul.f32 %v47, %v815
  %v895 = vmul.f32 %v48, %v819
  %v896 = vmul.f32 %v49, %v823
  %v897 = vmul.f32 %v50, %v827
  %v898 = vmul.f32 %v51, %v831
  %v899 = vmul.f32 %v52, %v835
  %v900 = vmul.f32 %v53, %v839
  %v901 = vmul.f32 %v54, %v843
  %v902 = vmul.f32 %v55, %v847
  %v903 = vmul.f32 %v56, %v854
  %v904 = vmul.f32 %v57, %v858
  %v905 = vmul.f32 %v58, %v862
  %v906 = vmul.f32 %v59, %v866
  %907 = vst.msk [vmem:[%s5] sm:$0xff] %vm60, %v867
  %908 = vst.msk [vmem:[%s5 + $0x8] sm:$0xff] %vm60, %v868
  %909 = vst.msk [vmem:[%s5 + $0x10] sm:$0xff] %vm60, %v869
  %910 = vst.msk [vmem:[%s5 + $0x18] sm:$0xff] %vm60, %v870
  %911 = vst.msk [vmem:[%s5 + $0x20] sm:$0xff] %vm60, %v871
  %912 = vst.msk [vmem:[%s5 + $0x28] sm:$0xff] %vm60, %v872
  %913 = vst.msk [vmem:[%s5 + $0x30] sm:$0xff] %vm60, %v873
  %914 = vst.msk [vmem:[%s5 + $0x38] sm:$0xff] %vm60, %v874
  %915 = vst.msk [vmem:[%s5 + $0x40] sm:$0xff] %vm60, %v875
  %916 = vst.msk [vmem:[%s5 + $0x48] sm:$0xff] %vm60, %v876
  %917 = vst.msk [vmem:[%s5 + $0x50] sm:$0xff] %vm60, %v877
  %918 = vst.msk [vmem:[%s5 + $0x58] sm:$0xff] %vm60, %v878
  %919 = vst.msk [vmem:[%s5 + $0x60] sm:$0xff] %vm60, %v879
  %920 = vst.msk [vmem:[%s5 + $0x68] sm:$0xff] %vm60, %v880
  %921 = vst.msk [vmem:[%s5 + $0x70] sm:$0xff] %vm60, %v881
  %922 = vst.msk [vmem:[%s5 + $0x78] sm:$0xff] %vm60, %v882
  %923 = vst.msk [vmem:[%s5 + $0x80] sm:$0xff] %vm60, %v883
  %924 = vst.msk [vmem:[%s5 + $0x88] sm:$0xff] %vm60, %v884
  %925 = vst.msk [vmem:[%s5 + $0x90] sm:$0xff] %vm60, %v885
  %926 = vst.msk [vmem:[%s5 + $0x98] sm:$0xff] %vm60, %v886
  %927 = vst.msk [vmem:[%s5 + $0xa0] sm:$0xff] %vm60, %v887
  %928 = vst.msk [vmem:[%s5 + $0xa8] sm:$0xff] %vm60, %v888
  %929 = vst.msk [vmem:[%s5 + $0xb0] sm:$0xff] %vm60, %v889
  %930 = vst.msk [vmem:[%s5 + $0xb8] sm:$0xff] %vm60, %v890
  %931 = vst.msk [vmem:[%s5 + $0xc0] sm:$0xff] %vm60, %v891
  %932 = vst.msk [vmem:[%s5 + $0xc8] sm:$0xff] %vm60, %v892
  %933 = vst.msk [vmem:[%s5 + $0xd0] sm:$0xff] %vm60, %v893
  %934 = vst.msk [vmem:[%s5 + $0xd8] sm:$0xff] %vm60, %v894
  %935 = vst.msk [vmem:[%s5 + $0xe0] sm:$0xff] %vm60, %v895
  %936 = vst.msk [vmem:[%s5 + $0xe8] sm:$0xff] %vm60, %v896
  %937 = vst.msk [vmem:[%s5 + $0xf0] sm:$0xff] %vm60, %v897
  %938 = vst.msk [vmem:[%s5 + $0xf8] sm:$0xff] %vm60, %v898
  %939 = vst.msk [vmem:[%s5 + $0x100] sm:$0xff] %vm60, %v899
  %940 = vst.msk [vmem:[%s5 + $0x108] sm:$0xff] %vm60, %v900
  %941 = vst.msk [vmem:[%s5 + $0x110] sm:$0xff] %vm60, %v901
  %942 = vst.msk [vmem:[%s5 + $0x118] sm:$0xff] %vm60, %v902
  %943 = vst.msk [vmem:[%s5 + $0x120] sm:$0xff] %vm60, %v903
  %944 = vst.msk [vmem:[%s5 + $0x128] sm:$0xff] %vm60, %v904
  %945 = vst.msk [vmem:[%s5 + $0x130] sm:$0xff] %vm60, %v905
  %946 = vst.msk [vmem:[%s5 + $0x138] sm:$0xff] %vm60, %v906
  // Predicated region
  $region22: #{freq_att_layer.1} parent=0 // pred_check
    _
  $region23: #{freq_att_layer.1} parent=0 // pred_check_branch
    %948 = sbr.rel (0) target = $region25
  $region24: #{freq_att_layer.1} parent=0 // pred_region
    _
  $region25: #{freq_att_layer.1} parent=0 // pred_fallthru
    _
  // Predicated region
  $region26: #{freq_att_layer.1} parent=0 // pred_check
    _
  $region27: #{freq_att_layer.1} parent=0 // pred_check_branch
    %950 = sbr.rel (0) target = $region29
  $region28: #{freq_att_layer.1} parent=0 // pred_region
    _
  $region29: #{freq_att_layer.1} parent=0 // pred_fallthru
    _

</llo_original>
